<compile_context>
chip_gen: v7x
topology: tpu7x:2x2x1
jax: 0.10.0
libtpu: 0.0.40
codegen_flags: <defaults>
</compile_context>

<pallas_src>
import functools

import jax
import jax.numpy as jnp
from jax.experimental import pallas as pl
from jax.experimental.pallas import tpu as pltpu


def _round_up(x: int, m: int) -> int:
    return (x + m - 1) // m * m


def _vmem_capacity_bytes() -> int:
    """Physical VMEM of the current TPU generation (conservative fallback)."""
    try:
        cap = int(pltpu.get_tpu_info().vmem_capacity_bytes)
        if cap > 0:
            return cap
    except Exception:
        pass
    return 64 << 20  # v7x per-TensorCore VMEM (smallest of the targets)


def _linear_t_kernel(w_ref, x_ref, o_ref, *scratch,
                     dim_in, tk, mask_k, compute_dtype):
    """One (tm, tn) output tile; reduction over the k (dim_in) grid axis.

    w_ref: (tm, tk) tile of W  (dim_out, dim_in)
    x_ref: (tn, tk) tile of x  (N, dim_in)  -- natural layout, NT contraction
    o_ref: (tm, tn) tile of the (dim_out, N) output
    scratch: optional f32 accumulator (only used for non-f32 outputs)
    """
    acc_ref = scratch[0] if scratch else o_ref
    k = pl.program_id(2)

    @pl.when(k == 0)
    def _init():
        acc_ref[...] = jnp.zeros_like(acc_ref)

    w_t = w_ref[...]
    x_t = x_ref[...]
    if mask_k:
        # Only the K tail needs masking: out-of-range K columns of the last
        # block contain garbage that would corrupt stored output elements.
        cols = jax.lax.broadcasted_iota(jnp.int32, (1, tk), 1) + k * tk
        valid = cols < dim_in
        w_t = jnp.where(valid, w_t, 0)
        x_t = jnp.where(valid, x_t, 0)
    if compute_dtype is not None:
        w_t = w_t.astype(compute_dtype)
        x_t = x_t.astype(compute_dtype)

    # W (tm, tk) . x (tn, tk)^T -> (tm, tn); both contract on their last axis.
    acc_ref[...] += jax.lax.dot_general(
        w_t, x_t,
        dimension_numbers=(((1,), (1,)), ((), ())),
        preferred_element_type=jnp.float32,
    )

    if scratch:
        @pl.when(k == pl.num_programs(2) - 1)
        def _finalize():
            o_ref[...] = acc_ref[...].astype(o_ref.dtype)


def linear_t(x, w, *, tm=None, tn=None, tk=None,
             compute_dtype=None, force_pallas=False):
    """LinearT forward: x (N, dim_in), w (dim_out, dim_in) -> (dim_out, N)."""
    assert x.ndim == 2 and w.ndim == 2
    n, dim_in = x.shape
    dim_out, dim_in_w = w.shape
    assert dim_in == dim_in_w, "dim_in mismatch between x and weight"

    out_dtype = jnp.result_type(x.dtype, w.dtype)

    # Tiny problems: dispatch + tile overheads dominate; XLA's fused dot wins.
    if not force_pallas and (n * dim_in * dim_out) < (1 << 18):
        return jax.lax.dot_general(
            w, x, dimension_numbers=(((1,), (1,)), ((), ())),
            preferred_element_type=out_dtype).astype(out_dtype)

    vmem_cap = _vmem_capacity_bytes()

    # Generation-aware defaults: 512x512 output tile everywhere; deeper K tile
    # on 128-MiB-VMEM parts (v5e/v6e), shallower on v7x's 64 MiB.
    tm = 512 if tm is None else _round_up(max(tm, 8), 8)        # sublane dim
    tn = 512 if tn is None else _round_up(max(tn, 128), 128)    # lane dim
    if tk is None:
        tk = 2048 if vmem_cap >= (100 << 20) else 1024
    else:
        tk = _round_up(max(tk, 128), 128)

    # A block equal to the full dim is always legal (no alignment needed), so
    # small dims get exact-size blocks (no padding waste, no tails).
    tm = min(tm, dim_out)
    tn = min(tn, n)
    tk = min(tk, dim_in)
    mask_k = (dim_in % tk) != 0

    grid = (pl.cdiv(dim_out, tm), pl.cdiv(n, tn), pl.cdiv(dim_in, tk))
    # TODO(synk): on v7x (2 TensorCores) a (1, 1, K) grid leaves one core idle;
    # splitting N or K across cores would recover it (correctness is unaffected).

    use_scratch = out_dtype != jnp.float32
    scratch_shapes = [pltpu.VMEM((tm, tn), jnp.float32)] if use_scratch else []

    # VMEM budget with the actual operand dtypes: double-buffered input tiles,
    # double-buffered output tile, plus the optional f32 accumulator.
    vmem_est = (2 * tm * tk * jnp.dtype(w.dtype).itemsize
                + 2 * tn * tk * jnp.dtype(x.dtype).itemsize
                + 2 * tm * tn * jnp.dtype(out_dtype).itemsize)
    if use_scratch:
        vmem_est += tm * tn * 4
    vmem_needed = int(vmem_est * 1.5)

    compiler_kwargs = dict(
        dimension_semantics=("parallel", "parallel", "arbitrary"))
    # Only raise the scoped-VMEM limit when the plan needs more than the
    # smallest generation default (16 MiB on v5e); cap at ~72% of physical.
    if vmem_needed > (16 << 20):
        compiler_kwargs["vmem_limit_bytes"] = min(
            vmem_needed, int(0.72 * vmem_cap))

    kernel = functools.partial(
        _linear_t_kernel, dim_in=dim_in, tk=tk, mask_k=mask_k,
        compute_dtype=compute_dtype)

    return pl.pallas_call(
        kernel,
        out_shape=jax.ShapeDtypeStruct((dim_out, n), out_dtype),
        grid_spec=pltpu.PrefetchScalarGridSpec(
            num_scalar_prefetch=0,
            grid=grid,
            in_specs=[
                pl.BlockSpec((tm, tk), lambda i, j, k: (i, k)),  # W tile
                pl.BlockSpec((tn, tk), lambda i, j, k: (j, k)),  # x tile (natural layout)
            ],
            out_specs=pl.BlockSpec((tm, tn), lambda i, j, k: (i, j)),
            scratch_shapes=scratch_shapes,
        ),
        compiler_params=pltpu.CompilerParams(**compiler_kwargs),
    )(w, x)


if __name__ == "__main__":
    key = jax.random.PRNGKey(0)
    kx1, kw1, kx2, kw2, kx3, kw3 = jax.random.split(key, 6)

    def make(kx, kw, n, dim_in, dim_out):
        x = jax.random.normal(kx, (n, dim_in), dtype=jnp.float32)
        bound = 1.0 / (dim_in ** 0.5)  # mimic nn.Linear's uniform init range
        w = jax.random.uniform(kw, (dim_out, dim_in), jnp.float32, -bound, bound)
        return x, w

    def ref(x, w):
        return (x @ w.T).T

    # 1) Tiny, module-consistent shapes, forced through the Pallas path
    #    (single-block grid, blocks equal to the full dims).
    x1, w1 = make(kx1, kw1, 8, 32, 16)
    out1 = jax.block_until_ready(linear_t(x1, w1, force_pallas=True))
    assert out1.shape == (16, 8)
    assert jnp.allclose(out1, ref(x1, w1), atol=1e-3, rtol=1e-3)
    # Same shapes through the small-problem XLA bypass.
    out1b = jax.block_until_ready(linear_t(x1, w1))
    assert jnp.allclose(out1b, ref(x1, w1), atol=1e-3, rtol=1e-3)

    # 2) Non-aligned dims with small explicit tiles: exercises M/N edge blocks
    #    and the in-kernel K-tail mask (300 % 256 != 0).
    x2, w2 = make(kx2, kw2, 200, 300, 72)
    out2 = jax.block_until_ready(linear_t(x2, w2, tm=64, tn=128, tk=256))
    assert out2.shape == (72, 200)
    assert jnp.allclose(out2, ref(x2, w2), atol=1e-3, rtol=1e-3)

    # 3) Default (generation-aware) tile plan on a modest aligned problem.
    x3, w3 = make(kx3, kw3, 384, 512, 256)
    out3 = jax.block_until_ready(linear_t(x3, w3))
    assert out3.shape == (256, 384)
    assert jnp.allclose(out3, ref(x3, w3), atol=1e-3, rtol=1e-3)

    print("KERNEL_OK")
</pallas_src>

<mosaic_0001>
module attributes {stable_mosaic.version = 11 : i64} {
  func.func @_linear_t_kernel(%arg0: i32, %arg1: i32, %arg2: i32, %arg3: memref<16x32xf32, #tpu.memory_space<vmem>>, %arg4: memref<8x32xf32, #tpu.memory_space<vmem>>, %arg5: memref<16x8xf32, #tpu.memory_space<vmem>>) attributes {dimension_semantics = [#tpu.dimension_semantics<parallel>, #tpu.dimension_semantics<parallel>, #tpu.dimension_semantics<arbitrary>], iteration_bounds = array<i64: 1, 1, 1>, scalar_prefetch = 0 : i64, scratch_operands = 0 : i64, tpu.core_type = #tpu.core_type<tc>, window_params = [{transform_indices = @transform_0, window_bounds = array<i64: 16, 32>}, {transform_indices = @transform_1, window_bounds = array<i64: 8, 32>}, {transform_indices = @transform_2, window_bounds = array<i64: 16, 8>}]} {
    %c0_i32 = arith.constant 0 : i32
    %0 = arith.cmpi eq, %arg2, %c0_i32 : i32
    %1 = arith.extui %0 : i1 to i32
    %c0_i32_0 = arith.constant 0 : i32
    %2 = arith.cmpi ne, %1, %c0_i32_0 : i32
    scf.if %2 {
      %cst_8 = arith.constant 0.000000e+00 : f32
      %9 = vector.broadcast %cst_8 : f32 to vector<16x8xf32>
      %c0_9 = arith.constant 0 : index
      %c0_10 = arith.constant 0 : index
      %10 = vector.load %arg5[%c0_9, %c0_10] : memref<16x8xf32, #tpu.memory_space<vmem>>, vector<16x8xf32>
      tpu.vector_store %arg5[%c0_9, %c0_10], %9 {strides = array<i32>} : memref<16x8xf32, #tpu.memory_space<vmem>>, vector<16x8xf32>,
    } else {
    }
    %c0 = arith.constant 0 : index
    %c0_1 = arith.constant 0 : index
    %3 = vector.load %arg3[%c0, %c0_1] : memref<16x32xf32, #tpu.memory_space<vmem>>, vector<16x32xf32>
    %c0_2 = arith.constant 0 : index
    %c0_3 = arith.constant 0 : index
    %4 = vector.load %arg4[%c0_2, %c0_3] : memref<8x32xf32, #tpu.memory_space<vmem>>, vector<8x32xf32>
    %c0_4 = arith.constant 0 : index
    %c0_5 = arith.constant 0 : index
    %5 = vector.load %arg5[%c0_4, %c0_5] : memref<16x8xf32, #tpu.memory_space<vmem>>, vector<16x8xf32>
    %cst = arith.constant dense<0.000000e+00> : vector<16x8xf32>
    %6 = tpu.matmul %3, %4, %cst {dimension_numbers = #tpu.dot_dimension_numbers<[1], [1], [0], [0], [0, 0, 1, 0], [], []>} : vector<16x32xf32>, vector<8x32xf32>, vector<16x8xf32> -> vector<16x8xf32>
    %7 = arith.addf %5, %6 : vector<16x8xf32>
    %c0_6 = arith.constant 0 : index
    %c0_7 = arith.constant 0 : index
    %8 = vector.load %arg5[%c0_6, %c0_7] : memref<16x8xf32, #tpu.memory_space<vmem>>, vector<16x8xf32>
    tpu.vector_store %arg5[%c0_6, %c0_7], %7 {strides = array<i32>} : memref<16x8xf32, #tpu.memory_space<vmem>>, vector<16x8xf32>,
    return
  }
  func.func @transform_0(%arg0: i32, %arg1: i32, %arg2: i32) -> (i32, i32) {
    %c0_i32 = arith.constant 0 : i32
    return %arg0, %arg2 : i32, i32
  }
  func.func @transform_1(%arg0: i32, %arg1: i32, %arg2: i32) -> (i32, i32) {
    %c0_i32 = arith.constant 0 : i32
    return %arg1, %arg2 : i32, i32
  }
  func.func @transform_2(%arg0: i32, %arg1: i32, %arg2: i32) -> (i32, i32) {
    %c0_i32 = arith.constant 0 : i32
    return %arg0, %arg1 : i32, i32
  }
}

</mosaic_0001>

<llo_original>
// kernel: tpu_custom_call.1
$region0: #{tpu_custom_call.1}
  #allocation0 [shape = 'u32[]', space=smem, size = 0x4, offset = 0x4, fixed_abs, tag = 'smem constant byte address 0x4 - core index']
  #allocation1 [shape = 'u32[144,128]{1,0:T(1,128)}', space=vmem, size = 0x12000, scoped, tag = 'internal scratch']
  %s0 = inlined_call_operand.hbm [shape: f32[16,32], index: 0, kind: input, shape index: {}]
  %s1 = inlined_call_operand.hbm [shape: f32[8,32], index: 1, kind: input, shape index: {}]
  %s2 = inlined_call_operand.vmem [shape: f32[16,8], index: 2, kind: output, shape index: {}]
  %s3 = sld [smem:[#allocation0]]
  $region30: #{tpu_custom_call.1} parent=0
    _
  %s5 = ssub.s32 1, %s3
  %s6 = scalar_select 0, %s5, %s3
  $region1: #{tpu_custom_call.1} parent=0
    #allocation2 [shape = 'u8[8192]{0}', space=vmem, size = 0x2000, scoped, tag = 'input window, operand 0, single buffered']
    #allocation3 [shape = 's32[1]{0}', space=sflag, size = 0x4, scoped, tag = 'scoped memory for tpu_custom_call.1']
    #allocation4 [shape = 'u8[4096]{0}', space=vmem, size = 0x1000, scoped, tag = 'input window, operand 1, single buffered']
    #allocation5 [shape = 's32[1]{0}', space=sflag, size = 0x4, scoped, tag = 'scoped memory for tpu_custom_call.1']
    %7 = vsyncpa [#allocation3], 0
    %8 = vsyncpa [#allocation5], 0
    // Predicated region
    $region2: #{tpu_custom_call.1} parent=1 // pred_check
      _
    $region3: #{tpu_custom_call.1} parent=1 // pred_check_branch
      %10 = sbr.rel (0) target = $region5
    $region4: #{tpu_custom_call.1} parent=1 // pred_region
      %s12 = ssub.s32 256, 256
      %13 = vsyncadd [#allocation3], %s12
      %s14 = sshll.u32 [#allocation2], 4
      %s15 = int_to_ptr.vmem [resolvable:$true] %s14
      %20 = dma.hbm_to_vmem [thread:$0]  %s0, 256, %s15, [#allocation3], 128, 128, 8
    $region5: #{tpu_custom_call.1} parent=1 // pred_fallthru
      _
    // Predicated region
    $region6: #{tpu_custom_call.1} parent=1 // pred_check
      _
    $region7: #{tpu_custom_call.1} parent=1 // pred_check_branch
      %22 = sbr.rel (0) target = $region9
    $region8: #{tpu_custom_call.1} parent=1 // pred_region
      %s24 = ssub.s32 128, 128
      %25 = vsyncadd [#allocation5], %s24
      %s27 = sshll.u32 [#allocation4], 4
      %s28 = int_to_ptr.vmem [resolvable:$true] %s27
      %30 = dma.hbm_to_vmem [thread:$0]  %s1, 128, %s28, [#allocation5]
    $region9: #{tpu_custom_call.1} parent=1 // pred_fallthru
      _
    // Predicated region
    $region10: #{tpu_custom_call.1} parent=1 // pred_check
      _
    $region11: #{tpu_custom_call.1} parent=1 // pred_check_branch
      %32 = sbr.rel (0) target = $region13
    $region12: #{tpu_custom_call.1} parent=1 // pred_region
      %33 = dma.done [#allocation3], 256
    $region13: #{tpu_custom_call.1} parent=1 // pred_fallthru
      _
    // Predicated region
    $region14: #{tpu_custom_call.1} parent=1 // pred_check
      _
    $region15: #{tpu_custom_call.1} parent=1 // pred_check_branch
      %35 = sbr.rel (0) target = $region17
    $region16: #{tpu_custom_call.1} parent=1 // pred_region
      %36 = dma.done [#allocation5], 128
    $region17: #{tpu_custom_call.1} parent=1 // pred_fallthru
      _
    %p37 = scmp.eq.s32.totalorder 0, 0
    // Predicated region
    $region18: #{tpu_custom_call.1} parent=1 // pred_check
      %p38 = pneg %p37
    $region19: #{tpu_custom_call.1} parent=1 // pred_check_branch
      %40 = sbr.rel (%p38) target = $region21
    $region20: #{tpu_custom_call.1} parent=1 // pred_region
      %vm41 = vcmask 64512
      %42 = vst.msk [vmem:[%s2] sm:$0xff] %vm41, 0.0
      %43 = vst.msk [vmem:[%s2 + $0x8] sm:$0xff] %vm41, 0.0
    $region21: #{tpu_custom_call.1} parent=1 // pred_fallthru
      _
    %v44 = vld [vmem:[#allocation2] sm:$0xff]
    %v45 = vld [vmem:[#allocation2 + $0x8] sm:$0xff]
    %v46 = vld [vmem:[#allocation4] sm:$0xff]
    %v47 = vld [vmem:[%s2] sm:$0xff]
    %v48 = vld [vmem:[%s2 + $0x8] sm:$0xff]
    %vm49 = vcmask 261120
    %v51 = vsel %vm49, %v44, 0
    %v54 = vsel %vm49, %v45, 0
    %v57 = vsel %vm49, %v46, 0
    %59 = vmatprep.subr.mxu0 0.0
    %60 = vmatpush1.xpose.msra.mxu0 %v57
    %61 = vmatprep.subr.mxu0 0.0
    %62 = vmatpush1.xpose.msra.mxu0 0.0
    %63 = vmatprep.subr.mxu0 0.0
    %64 = vmatpush1.xpose.msra.mxu0 0.0
    %65 = vmatprep.subr.mxu0 0.0
    %66 = vmatpush1.xpose.msra.mxu0 0.0
    %67 = vmatprep.subr.mxu0 0.0
    %68 = vmatpush1.xpose.msra.mxu0 0.0
    %69 = vmatprep.subr.mxu0 0.0
    %70 = vmatpush1.xpose.msra.mxu0 0.0
    %71 = vmatprep.subr.mxu0 0.0
    %72 = vmatpush1.xpose.msra.mxu0 0.0
    %73 = vmatprep.subr.mxu0 0.0
    %74 = vmatpush1.xpose.msra.mxu0 0.0
    %75 = vmatprep.subr.mxu0 0.0
    %76 = vmatpush1.xpose.msra.mxu0 0.0
    %77 = vmatprep.subr.mxu0 0.0
    %78 = vmatpush1.xpose.msra.mxu0 0.0
    %79 = vmatprep.subr.mxu0 0.0
    %80 = vmatpush1.xpose.msra.mxu0 0.0
    %81 = vmatprep.subr.mxu0 0.0
    %82 = vmatpush1.xpose.msra.mxu0 0.0
    %83 = vmatprep.subr.mxu0 0.0
    %84 = vmatpush1.xpose.msra.mxu0 0.0
    %85 = vmatprep.subr.mxu0 0.0
    %86 = vmatpush1.xpose.msra.mxu0 0.0
    %87 = vmatprep.subr.mxu0 0.0
    %88 = vmatpush1.xpose.msra.mxu0 0.0
    %89 = vmatprep.subr.mxu0 0.0
    %90 = vmatpush1.xpose.msra.mxu0 0.0
    %91 = vmatprep.subr.mxu0 0.0
    %92 = vmatpush1.xpose.msra.mxu0 0.0
    %93 = vmatprep.subr.mxu0 0.0
    %94 = vmatpush1.xpose.msra.mxu0 0.0
    %95 = vmatprep.subr.mxu0 0.0
    %96 = vmatpush1.xpose.msra.mxu0 0.0
    %97 = vmatprep.subr.mxu0 0.0
    %98 = vmatpush1.xpose.msra.mxu0 0.0
    %99 = vmatprep.subr.mxu0 0.0
    %100 = vmatpush1.xpose.msra.mxu0 0.0
    %101 = vmatprep.subr.mxu0 0.0
    %102 = vmatpush1.xpose.msra.mxu0 0.0
    %103 = vmatprep.subr.mxu0 0.0
    %104 = vmatpush1.xpose.msra.mxu0 0.0
    %105 = vmatprep.subr.mxu0 0.0
    %106 = vmatpush1.xpose.msra.mxu0 0.0
    %107 = vmatprep.subr.mxu0 0.0
    %108 = vmatpush1.xpose.msra.mxu0 0.0
    %109 = vmatprep.subr.mxu0 0.0
    %110 = vmatpush1.xpose.msra.mxu0 0.0
    %111 = vmatprep.subr.mxu0 0.0
    %112 = vmatpush1.xpose.msra.mxu0 0.0
    %113 = vmatprep.subr.mxu0 0.0
    %114 = vmatpush1.xpose.msra.mxu0 0.0
    %115 = vmatprep.subr.mxu0 0.0
    %116 = vmatpush1.xpose.msra.mxu0 0.0
    %117 = vmatprep.subr.mxu0 0.0
    %118 = vmatpush1.xpose.msra.mxu0 0.0
    %119 = vmatprep.subr.mxu0 0.0
    %120 = vmatpush1.xpose.msra.mxu0 0.0
    %121 = vmatprep.subr.mxu0 0.0
    %122 = vmatpush1.xpose.msra.mxu0 0.0
    %123 = vmatprep.mubr.f32.mxu0 0.0
    %124 = vmatmul.mubr.f32.gmra.mrb[0].mxu0 %v51
    %v125 = vpop.f32.mrb[0].mxu0
    %v126 = vadd.f32 0.0, %v125
    %v127 = vpop.f32.mrb[0].mxu0
    %128 = vmatprep.mubr.f32.mxu0 0.0
    %129 = vmatmul.mubr.f32.gmra.mrb[0].mxu0 %v54
    %v130 = vpop.f32.mrb[0].mxu0
    %v131 = vadd.f32 0.0, %v130
    %v132 = vpop.f32.mrb[0].mxu0
    %133 = vdwg.mxu0
    %v134 = vadd.f32 %v47, %v126
    %v135 = vadd.f32 %v48, %v131
    %vm136 = vcmask 64512
    %137 = vst.msk [vmem:[%s2] sm:$0xff] %vm136, %v134
    %138 = vst.msk [vmem:[%s2 + $0x8] sm:$0xff] %vm136, %v135
    // Predicated region
    $region22: #{tpu_custom_call.1} parent=1 // pred_check
      _
    $region23: #{tpu_custom_call.1} parent=1 // pred_check_branch
      %140 = sbr.rel (0) target = $region25
    $region24: #{tpu_custom_call.1} parent=1 // pred_region
      _
    $region25: #{tpu_custom_call.1} parent=1 // pred_fallthru
      _
    // Predicated region
    $region26: #{tpu_custom_call.1} parent=1 // pred_check
      _
    $region27: #{tpu_custom_call.1} parent=1 // pred_check_branch
      %142 = sbr.rel (0) target = $region29
    $region28: #{tpu_custom_call.1} parent=1 // pred_region
      _
    $region29: #{tpu_custom_call.1} parent=1 // pred_fallthru
      _
    %143 = vsyncpa [#allocation3], 1
    %144 = vsyncpa [#allocation5], 1

</llo_original>
